<compile_context>
chip_gen: v6e
topology: v6e:2x2x1
jax: 0.10.0
libtpu: 0.0.40
codegen_flags: <defaults>
</compile_context>

<pallas_src>
import functools
import math

import jax
import jax.numpy as jnp
from jax import lax
from jax.experimental import pallas as pl
from jax.experimental.pallas import tpu as pltpu


_VMEM_LIMIT = 48 * 1024 * 1024   # raise scoped VMEM above the 16/32 MiB defaults


def _cparams(n_axes):
    return pltpu.CompilerParams(
        dimension_semantics=("parallel",) * n_axes,
        vmem_limit_bytes=_VMEM_LIMIT,
    )


def _token_tile(T):
    for cand in (256, 128, 64, 32, 16, 8):
        if T % cand == 0:
            return cand
    return T            # block == full dim is always legal


def _vocab_tile(V):
    for cand in (2048, 1024, 512, 256, 128):
        if V % cand == 0:
            return cand
    return V


# ----------------------------- in-kernel helpers -----------------------------

def _layernorm(x, scale, shift, eps=1e-5):
    # PyTorch LayerNorm in the module: mean / biased var over last dim (f32 math).
    mean = jnp.mean(x, axis=-1, keepdims=True)
    var = jnp.mean(jnp.square(x - mean), axis=-1, keepdims=True)
    return scale * ((x - mean) * lax.rsqrt(var + eps)) + shift


def _gelu(x):
    c = math.sqrt(2.0 / math.pi)
    return 0.5 * x * (1.0 + jnp.tanh(c * (x + 0.044715 * x * x * x)))


# --------------------- K1: LayerNorm1 + fused QKV projection -----------------

def ln_qkv_kernel(x_ref, s_ref, b_ref, wqkv_ref, q_ref, k_ref, v_ref):
    x = x_ref[0]                                    # (TT, D) f32
    D = x.shape[-1]
    xn = _layernorm(x, s_ref[...], b_ref[...])
    qkv = jnp.dot(xn.astype(jnp.bfloat16), wqkv_ref[...],
                  preferred_element_type=jnp.float32)        # (TT, 3D) f32 acc
    q_ref[0] = qkv[:, :D].astype(jnp.bfloat16)
    k_ref[0] = qkv[:, D:2 * D].astype(jnp.bfloat16)
    v_ref[0] = qkv[:, 2 * D:3 * D].astype(jnp.bfloat16)


def run_ln_qkv(x, n1s, n1b, wqkv):
    B, T, D = x.shape
    TT = _token_tile(T)
    grid = (B, T // TT)
    row = pl.BlockSpec((1, TT, D), lambda b, t: (b, t, 0))
    vecD = pl.BlockSpec((1, D), lambda b, t: (0, 0))
    wspec = pl.BlockSpec((D, 3 * D), lambda b, t: (0, 0))
    out_sds = jax.ShapeDtypeStruct((B, T, D), jnp.bfloat16)
    cost = pl.CostEstimate(
        flops=2 * B * T * D * 3 * D,
        transcendentals=B * T,
        bytes_accessed=B * T * D * 4 + 3 * D * D * 2 + 3 * B * T * D * 2,
    )
    return pl.pallas_call(
        ln_qkv_kernel,
        grid=grid,
        in_specs=[row, vecD, vecD, wspec],
        out_specs=(row, row, row),
        out_shape=(out_sds, out_sds, out_sds),
        compiler_params=_cparams(2),
        cost_estimate=cost,
    )(x, n1s, n1b, wqkv)


# --------------------- K2: head-batched causal attention core -----------------

def attention_kernel(q_ref, k_ref, v_ref, out_ref):
    q = q_ref[0]                                    # (H, TQ, hd) bf16
    k = k_ref[0]                                    # (H, T,  hd) bf16
    v = v_ref[0]                                    # (H, T,  hd) bf16
    H, TQ, hd = q.shape
    T = k.shape[1]

    scores = jnp.einsum('hqd,hkd->hqk', q, k,
                        preferred_element_type=jnp.float32)  # (H, TQ, T) f32
    scores = scores * (1.0 / math.sqrt(hd))

    q0 = pl.program_id(1) * TQ
    qpos = q0 + lax.broadcasted_iota(jnp.int32, (TQ, T), 0)
    kpos = lax.broadcasted_iota(jnp.int32, (TQ, T), 1)
    scores = jnp.where((kpos > qpos)[None, :, :], jnp.float32(-1e30), scores)

    m = jnp.max(scores, axis=-1, keepdims=True)
    e = jnp.exp(scores - m)
    denom = jnp.sum(e, axis=-1, keepdims=True)
    attn = e * pl.reciprocal(denom, approx=True)

    ctx = jnp.einsum('hqk,hkd->hqd', attn.astype(jnp.bfloat16), v,
                     preferred_element_type=jnp.float32)     # (H, TQ, hd) f32
    out_ref[0] = ctx.astype(jnp.bfloat16)


def run_attention(q4, k4, v4):
    # q4/k4/v4: (B, H, T, hd) bf16
    B, H, T, hd = q4.shape
    TQ = _token_tile(T)
    grid = (B, T // TQ)
    q_spec = pl.BlockSpec((1, H, TQ, hd), lambda b, t: (b, 0, t, 0))
    kv_spec = pl.BlockSpec((1, H, T, hd), lambda b, t: (b, 0, 0, 0))
    cost = pl.CostEstimate(
        flops=4 * B * H * T * T * hd,
        transcendentals=B * H * T * T,
        bytes_accessed=4 * B * H * T * hd * 2,
    )
    # TODO(synk): for long sequences, stream K/V tiles flash-style with online softmax
    # and skip fully-masked future key tiles; full-seq K/V per q-tile is fine here.
    return pl.pallas_call(
        attention_kernel,
        grid=grid,
        in_specs=[q_spec, kv_spec, kv_spec],
        out_specs=q_spec,
        out_shape=jax.ShapeDtypeStruct((B, H, T, hd), jnp.bfloat16),
        compiler_params=_cparams(2),
        cost_estimate=cost,
    )(q4, k4, v4)


# --------- K3: out-proj + residual + LayerNorm2 + FF(GELU) + residual ---------

def mlp_kernel(x_ref, ctx_ref, wo_ref, bo_ref, n2s_ref, n2b_ref,
               w1_ref, b1_ref, w2_ref, b2_ref, out_ref):
    x = x_ref[0]                                    # (TT, D) f32 residual
    ctx = ctx_ref[0]                                # (TT, D) bf16

    attn_out = jnp.dot(ctx, wo_ref[...],
                       preferred_element_type=jnp.float32) + bo_ref[...]
    x1 = x + attn_out                               # residual (dropout = identity)

    xn = _layernorm(x1, n2s_ref[...], n2b_ref[...])
    h = jnp.dot(xn.astype(jnp.bfloat16), w1_ref[...],
                preferred_element_type=jnp.float32) + b1_ref[...]
    h = _gelu(h)
    ff = jnp.dot(h.astype(jnp.bfloat16), w2_ref[...],
                 preferred_element_type=jnp.float32) + b2_ref[...]
    out_ref[0] = x1 + ff                            # residual (dropout = identity)


def run_mlp(x, ctx, wo, bo, n2s, n2b, w1, b1, w2, b2):
    B, T, D = x.shape
    F = w1.shape[-1]
    TT = _token_tile(T)
    grid = (B, T // TT)
    row = pl.BlockSpec((1, TT, D), lambda b, t: (b, t, 0))
    vecD = pl.BlockSpec((1, D), lambda b, t: (0, 0))
    vecF = pl.BlockSpec((1, F), lambda b, t: (0, 0))
    wo_s = pl.BlockSpec((D, D), lambda b, t: (0, 0))
    w1_s = pl.BlockSpec((D, F), lambda b, t: (0, 0))
    w2_s = pl.BlockSpec((F, D), lambda b, t: (0, 0))
    cost = pl.CostEstimate(
        flops=2 * B * T * D * D + 4 * B * T * D * F,
        transcendentals=B * T * F,
        bytes_accessed=2 * B * T * D * 4 + B * T * D * 2 + (D * D + 2 * D * F) * 2,
    )
    return pl.pallas_call(
        mlp_kernel,
        grid=grid,
        in_specs=[row, row, wo_s, vecD, vecD, vecD, w1_s, vecF, w2_s, vecD],
        out_specs=row,
        out_shape=jax.ShapeDtypeStruct((B, T, D), jnp.float32),
        compiler_params=_cparams(2),
        cost_estimate=cost,
    )(x, ctx, wo, bo, n2s, n2b, w1, b1, w2, b2)


# --------------------- K4: final LayerNorm + lm head (vocab-tiled) -------------

def final_head_kernel(x_ref, s_ref, b_ref, w_ref, out_ref):
    x = x_ref[0]                                    # (TT, D) f32
    xn = _layernorm(x, s_ref[...], b_ref[...])
    out_ref[0] = jnp.dot(xn.astype(jnp.bfloat16), w_ref[...],
                         preferred_element_type=jnp.float32)


def run_final_head(x, fns, fnb, wout):
    B, T, D = x.shape
    V = wout.shape[-1]
    TT = _token_tile(T)
    TV = _vocab_tile(V)
    grid = (B, T // TT, V // TV)
    row = pl.BlockSpec((1, TT, D), lambda b, t, v: (b, t, 0))
    vecD = pl.BlockSpec((1, D), lambda b, t, v: (0, 0))
    wspec = pl.BlockSpec((D, TV), lambda b, t, v: (0, v))
    ospec = pl.BlockSpec((1, TT, TV), lambda b, t, v: (b, t, v))
    cost = pl.CostEstimate(
        flops=2 * B * T * D * V,
        transcendentals=B * T,
        bytes_accessed=B * T * D * 4 + D * V * 2 + B * T * V * 4,
    )
    return pl.pallas_call(
        final_head_kernel,
        grid=grid,
        in_specs=[row, vecD, vecD, wspec],
        out_specs=ospec,
        out_shape=jax.ShapeDtypeStruct((B, T, V), jnp.float32),
        compiler_params=_cparams(3),
        cost_estimate=cost,
    )(x, fns, fnb, wout)


# ----------------------------- head split/merge glue ---------------------------

def _split_heads(t, num_heads):
    B, T, D = t.shape
    hd = D // num_heads
    return t.reshape(B, T, num_heads, hd).swapaxes(1, 2)    # (B, H, T, hd)


def _merge_heads(t):
    B, H, T, hd = t.shape
    return t.swapaxes(1, 2).reshape(B, T, H * hd)           # (B, T, D)


# ----------------------------- model -------------------------------------------

def init_params(key, cfg):
    D = cfg['emb_dim']
    V = cfg['vocab_size']
    C = cfg['context_length']
    n_layers = cfg['n_layers']

    def normal(k, shape, scale=0.02, dtype=jnp.float32):
        return (scale * jax.random.normal(k, shape)).astype(dtype)

    keys = jax.random.split(key, 3 + 4 * n_layers)
    ki = iter(keys)

    params = {
        'tok_emb': normal(next(ki), (V, D)),
        'pos_emb': normal(next(ki), (C, D)),
        'w_out': normal(next(ki), (D, V), dtype=jnp.bfloat16),
        'fn_s': jnp.ones((1, D), jnp.float32),
        'fn_b': jnp.zeros((1, D), jnp.float32),
        'blocks': [],
    }
    for _ in range(n_layers):
        blk = {
            'n1s': jnp.ones((1, D), jnp.float32),
            'n1b': jnp.zeros((1, D), jnp.float32),
            'wqkv': normal(next(ki), (D, 3 * D), dtype=jnp.bfloat16),
            'wo': normal(next(ki), (D, D), dtype=jnp.bfloat16),
            'bo': jnp.zeros((1, D), jnp.float32),
            'n2s': jnp.ones((1, D), jnp.float32),
            'n2b': jnp.zeros((1, D), jnp.float32),
            'w1': normal(next(ki), (D, 4 * D), dtype=jnp.bfloat16),
            'b1': jnp.zeros((1, 4 * D), jnp.float32),
            'w2': normal(next(ki), (4 * D, D), dtype=jnp.bfloat16),
            'b2': jnp.zeros((1, D), jnp.float32),
        }
        params['blocks'].append(blk)
    return params


def gpt_forward(params, in_idx, cfg):
    B, T = in_idx.shape
    H = cfg['n_heads']
    # Embedding lookups (gather stays in plain JAX glue).
    tok = jnp.take(params['tok_emb'], in_idx, axis=0)        # (B, T, D)
    pos = params['pos_emb'][:T]                              # (T, D)
    x = (tok + pos[None, :, :]).astype(jnp.float32)
    # drop_emb: drop_rate = 0.0 -> identity.
    for blk in params['blocks']:
        q, k, v = run_ln_qkv(x, blk['n1s'], blk['n1b'], blk['wqkv'])
        ctx4 = run_attention(_split_heads(q, H), _split_heads(k, H), _split_heads(v, H))
        ctx = _merge_heads(ctx4)
        x = run_mlp(x, ctx, blk['wo'], blk['bo'], blk['n2s'], blk['n2b'],
                    blk['w1'], blk['b1'], blk['w2'], blk['b2'])
    logits = run_final_head(x, params['fn_s'], params['fn_b'], params['w_out'])
    return logits


# ----------------------------- main ---------------------------------------------

if __name__ == "__main__":
    cfg = {
        'vocab_size': 128,
        'context_length': 16,
        'emb_dim': 32,
        'n_heads': 4,
        'n_layers': 2,
        'drop_rate': 0.0,      # dropout is identity (eval semantics)
        'qkv_bias': False,
    }
    assert cfg['emb_dim'] % cfg['n_heads'] == 0

    key = jax.random.PRNGKey(0)
    k_params, k_idx = jax.random.split(key)

    params = init_params(k_params, cfg)

    B, T = 2, 8
    in_idx = jax.random.randint(k_idx, (B, T), 0, cfg['vocab_size'], dtype=jnp.int32)

    logits = gpt_forward(params, in_idx, cfg)
    logits = jax.block_until_ready(logits)

    assert logits.shape == (B, T, cfg['vocab_size'])
    assert bool(jnp.all(jnp.isfinite(logits)))
    print("KERNEL_OK")
</pallas_src>

<mosaic_0001>
module attributes {stable_mosaic.version = 11 : i64} {
  func.func @ln_qkv_kernel(%arg0: i32, %arg1: i32, %arg2: memref<1x8x32xf32, #tpu.memory_space<vmem>>, %arg3: memref<1x32xf32, #tpu.memory_space<vmem>>, %arg4: memref<1x32xf32, #tpu.memory_space<vmem>>, %arg5: memref<32x96xbf16, #tpu.memory_space<vmem>>, %arg6: memref<1x8x32xbf16, #tpu.memory_space<vmem>>, %arg7: memref<1x8x32xbf16, #tpu.memory_space<vmem>>, %arg8: memref<1x8x32xbf16, #tpu.memory_space<vmem>>) attributes {dimension_semantics = [#tpu.dimension_semantics<parallel>, #tpu.dimension_semantics<parallel>], iteration_bounds = array<i64: 2, 1>, scalar_prefetch = 0 : i64, scratch_operands = 0 : i64, tpu.core_type = #tpu.core_type<tc>, window_params = [{transform_indices = @transform_0, window_bounds = array<i64: 1, 8, 32>}, {pipeline_mode = #tpu.pipeline_mode<synchronous>, transform_indices = @transform_1, window_bounds = array<i64: 1, 32>}, {pipeline_mode = #tpu.pipeline_mode<synchronous>, transform_indices = @transform_2, window_bounds = array<i64: 1, 32>}, {pipeline_mode = #tpu.pipeline_mode<synchronous>, transform_indices = @transform_3, window_bounds = array<i64: 32, 96>}, {transform_indices = @transform_4, window_bounds = array<i64: 1, 8, 32>}, {transform_indices = @transform_5, window_bounds = array<i64: 1, 8, 32>}, {transform_indices = @transform_6, window_bounds = array<i64: 1, 8, 32>}]} {
    %c0 = arith.constant 0 : index
    %c0_0 = arith.constant 0 : index
    %c0_1 = arith.constant 0 : index
    %0 = vector.load %arg2[%c0, %c0_0, %c0_1] : memref<1x8x32xf32, #tpu.memory_space<vmem>>, vector<1x8x32xf32>
    %1 = vector.shape_cast %0 : vector<1x8x32xf32> to vector<8x32xf32>
    %c0_2 = arith.constant 0 : index
    %c0_3 = arith.constant 0 : index
    %2 = vector.load %arg3[%c0_2, %c0_3] : memref<1x32xf32, #tpu.memory_space<vmem>>, vector<1x32xf32>
    %c0_4 = arith.constant 0 : index
    %c0_5 = arith.constant 0 : index
    %3 = vector.load %arg4[%c0_4, %c0_5] : memref<1x32xf32, #tpu.memory_space<vmem>>, vector<1x32xf32>
    %cst = arith.constant dense<0.000000e+00> : vector<8xf32>
    %4 = vector.multi_reduction <add>, %1, %cst [1] : vector<8x32xf32> to vector<8xf32>
    %5 = vector.shape_cast %4 : vector<8xf32> to vector<8x1xf32>
    %cst_6 = arith.constant 3.200000e+01 : f32
    %6 = vector.broadcast %cst_6 : f32 to vector<8x1xf32>
    %7 = arith.divf %5, %6 : vector<8x1xf32>
    %8 = vector.broadcast %7 : vector<8x1xf32> to vector<8x32xf32>
    %9 = arith.subf %1, %8 : vector<8x32xf32>
    %10 = arith.mulf %9, %9 : vector<8x32xf32>
    %cst_7 = arith.constant dense<0.000000e+00> : vector<8xf32>
    %11 = vector.multi_reduction <add>, %10, %cst_7 [1] : vector<8x32xf32> to vector<8xf32>
    %12 = vector.shape_cast %11 : vector<8xf32> to vector<8x1xf32>
    %cst_8 = arith.constant 3.200000e+01 : f32
    %13 = vector.broadcast %cst_8 : f32 to vector<8x1xf32>
    %14 = arith.divf %12, %13 : vector<8x1xf32>
    %15 = vector.broadcast %7 : vector<8x1xf32> to vector<8x32xf32>
    %16 = arith.subf %1, %15 : vector<8x32xf32>
    %cst_9 = arith.constant 9.99999974E-6 : f32
    %17 = vector.broadcast %cst_9 : f32 to vector<8x1xf32>
    %18 = arith.addf %14, %17 : vector<8x1xf32>
    %19 = math.rsqrt %18 : vector<8x1xf32>
    %20 = vector.broadcast %19 : vector<8x1xf32> to vector<8x32xf32>
    %21 = arith.mulf %16, %20 : vector<8x32xf32>
    %22 = vector.broadcast %2 : vector<1x32xf32> to vector<8x32xf32>
    %23 = arith.mulf %22, %21 : vector<8x32xf32>
    %24 = vector.broadcast %3 : vector<1x32xf32> to vector<8x32xf32>
    %25 = arith.addf %23, %24 : vector<8x32xf32>
    %26 = arith.truncf %25 : vector<8x32xf32> to vector<8x32xbf16>
    %c0_10 = arith.constant 0 : index
    %c0_11 = arith.constant 0 : index
    %27 = vector.load %arg5[%c0_10, %c0_11] : memref<32x96xbf16, #tpu.memory_space<vmem>>, vector<32x96xbf16>
    %cst_12 = arith.constant dense<0.000000e+00> : vector<8x96xf32>
    %28 = tpu.matmul %26, %27, %cst_12 {dimension_numbers = #tpu.dot_dimension_numbers<[1], [0], [0], [1], [0, 0, 1, 1], [], []>} : vector<8x32xbf16>, vector<32x96xbf16>, vector<8x96xf32> -> vector<8x96xf32>
    %29 = vector.extract_strided_slice %28 {offsets = [0, 0], sizes = [8, 32], strides = [1, 1]} : vector<8x96xf32> to vector<8x32xf32>
    %30 = arith.truncf %29 : vector<8x32xf32> to vector<8x32xbf16>
    %c0_13 = arith.constant 0 : index
    %c0_14 = arith.constant 0 : index
    %c0_15 = arith.constant 0 : index
    %31 = vector.load %arg6[%c0_13, %c0_14, %c0_15] : memref<1x8x32xbf16, #tpu.memory_space<vmem>>, vector<1x8x32xbf16>
    %32 = vector.shape_cast %31 : vector<1x8x32xbf16> to vector<8x32xbf16>
    %33 = vector.shape_cast %30 : vector<8x32xbf16> to vector<1x8x32xbf16>
    tpu.vector_store %arg6[%c0_13, %c0_14, %c0_15], %33 {strides = array<i32>} : memref<1x8x32xbf16, #tpu.memory_space<vmem>>, vector<1x8x32xbf16>,
    %34 = vector.extract_strided_slice %28 {offsets = [0, 32], sizes = [8, 32], strides = [1, 1]} : vector<8x96xf32> to vector<8x32xf32>
    %35 = arith.truncf %34 : vector<8x32xf32> to vector<8x32xbf16>
    %c0_16 = arith.constant 0 : index
    %c0_17 = arith.constant 0 : index
    %c0_18 = arith.constant 0 : index
    %36 = vector.load %arg7[%c0_16, %c0_17, %c0_18] : memref<1x8x32xbf16, #tpu.memory_space<vmem>>, vector<1x8x32xbf16>
    %37 = vector.shape_cast %36 : vector<1x8x32xbf16> to vector<8x32xbf16>
    %38 = vector.shape_cast %35 : vector<8x32xbf16> to vector<1x8x32xbf16>
    tpu.vector_store %arg7[%c0_16, %c0_17, %c0_18], %38 {strides = array<i32>} : memref<1x8x32xbf16, #tpu.memory_space<vmem>>, vector<1x8x32xbf16>,
    %39 = vector.extract_strided_slice %28 {offsets = [0, 64], sizes = [8, 32], strides = [1, 1]} : vector<8x96xf32> to vector<8x32xf32>
    %40 = arith.truncf %39 : vector<8x32xf32> to vector<8x32xbf16>
    %c0_19 = arith.constant 0 : index
    %c0_20 = arith.constant 0 : index
    %c0_21 = arith.constant 0 : index
    %41 = vector.load %arg8[%c0_19, %c0_20, %c0_21] : memref<1x8x32xbf16, #tpu.memory_space<vmem>>, vector<1x8x32xbf16>
    %42 = vector.shape_cast %41 : vector<1x8x32xbf16> to vector<8x32xbf16>
    %43 = vector.shape_cast %40 : vector<8x32xbf16> to vector<1x8x32xbf16>
    tpu.vector_store %arg8[%c0_19, %c0_20, %c0_21], %43 {strides = array<i32>} : memref<1x8x32xbf16, #tpu.memory_space<vmem>>, vector<1x8x32xbf16>,
    return
  }
  func.func @transform_0(%arg0: i32, %arg1: i32) -> (i32, i32, i32) {
    %c0_i32 = arith.constant 0 : i32
    %c0_i32_0 = arith.constant 0 : i32
    return %arg0, %arg1, %c0_i32 : i32, i32, i32
  }
  func.func @transform_1(%arg0: i32, %arg1: i32) -> (i32, i32) {
    %c0_i32 = arith.constant 0 : i32
    %c0_i32_0 = arith.constant 0 : i32
    %c0_i32_1 = arith.constant 0 : i32
    return %c0_i32, %c0_i32_0 : i32, i32
  }
  func.func @transform_2(%arg0: i32, %arg1: i32) -> (i32, i32) {
    %c0_i32 = arith.constant 0 : i32
    %c0_i32_0 = arith.constant 0 : i32
    %c0_i32_1 = arith.constant 0 : i32
    return %c0_i32, %c0_i32_0 : i32, i32
  }
  func.func @transform_3(%arg0: i32, %arg1: i32) -> (i32, i32) {
    %c0_i32 = arith.constant 0 : i32
    %c0_i32_0 = arith.constant 0 : i32
    %c0_i32_1 = arith.constant 0 : i32
    return %c0_i32, %c0_i32_0 : i32, i32
  }
  func.func @transform_4(%arg0: i32, %arg1: i32) -> (i32, i32, i32) {
    %c0_i32 = arith.constant 0 : i32
    %c0_i32_0 = arith.constant 0 : i32
    return %arg0, %arg1, %c0_i32 : i32, i32, i32
  }
  func.func @transform_5(%arg0: i32, %arg1: i32) -> (i32, i32, i32) {
    %c0_i32 = arith.constant 0 : i32
    %c0_i32_0 = arith.constant 0 : i32
    return %arg0, %arg1, %c0_i32 : i32, i32, i32
  }
  func.func @transform_6(%arg0: i32, %arg1: i32) -> (i32, i32, i32) {
    %c0_i32 = arith.constant 0 : i32
    %c0_i32_0 = arith.constant 0 : i32
    return %arg0, %arg1, %c0_i32 : i32, i32, i32
  }
}

</mosaic_0001>

<llo_original>
// kernel: tpu_custom_call.1
$region0: #{tpu_custom_call.1}
  #allocation0 [shape = 'u32[]', space=smem, size = 0x4, offset = 0x4, fixed_abs, tag = 'smem constant byte address 0x4 - core index']
  #allocation1 [shape = 'u32[144,128]{1,0:T(1,128)}', space=vmem, size = 0x12000, scoped, tag = 'internal scratch']
  %s0 = inlined_call_operand.hbm [shape: f32[2,8,32], index: 0, kind: input, shape index: {}]
  %s1 = inlined_call_operand.vmem [shape: f32[1,32], index: 1, kind: input, shape index: {}]
  %s2 = inlined_call_operand.vmem [shape: f32[1,32], index: 2, kind: input, shape index: {}]
  %s3 = inlined_call_operand.hbm [shape: bf16[32,96], index: 3, kind: input, shape index: {}]
  %s4 = inlined_call_operand.hbm [shape: bf16[2,8,32], index: 4, kind: output, shape index: {0}]
  %s5 = inlined_call_operand.hbm [shape: bf16[2,8,32], index: 5, kind: output, shape index: {1}]
  %s6 = inlined_call_operand.hbm [shape: bf16[2,8,32], index: 6, kind: output, shape index: {2}]
  %7 = xla_tuple %s4, %s5, %s6
  %s8 = sld [smem:[#allocation0]]
  $region73: #{tpu_custom_call.1} parent=0
    _
  %s10 = ssub.s32 1, %s8
  %s11 = scalar_select 0, %s10, %s8
  $region1: #{tpu_custom_call.1} parent=0
    #allocation2 [shape = 'u8[8192]{0}', space=vmem, size = 0x2000, scoped, tag = 'input window, operand 0']
    #allocation3 [shape = 's32[2]{0}', space=sflag, size = 0x8, scoped, tag = 'scoped memory for tpu_custom_call.1']
    #allocation4 [shape = 's32[2]{0}', space=sflag, size = 0x8, scoped, tag = 'scoped memory for tpu_custom_call.1']
    #allocation5 [shape = 'u8[8192]{0}', space=vmem, size = 0x2000, scoped, tag = 'input window, operand 3, single buffered']
    #allocation6 [shape = 's32[1]{0}', space=sflag, size = 0x4, scoped, tag = 'scoped memory for tpu_custom_call.1']
    #allocation7 [shape = 'u8[4096]{0}', space=vmem, size = 0x1000, scoped, tag = 'output window, operand 0']
    #allocation8 [shape = 'u8[4096]{0}', space=vmem, size = 0x1000, scoped, tag = 'output window, operand 1']
    #allocation9 [shape = 's32[2]{0}', space=sflag, size = 0x8, scoped, tag = 'scoped memory for tpu_custom_call.1']
    #allocation10 [shape = 'u8[4096]{0}', space=vmem, size = 0x1000, scoped, tag = 'output window, operand 2']
    %12 = vsyncpa [#allocation3], 0
    %s13 = scalar_lea.sflag [#allocation3], 1
    %14 = vsyncpa %s13, 0
    %15 = vsyncpa [#allocation6], 0
    %16 = vsyncpa [#allocation4], 0
    %s17 = scalar_lea.sflag [#allocation4], 1
    %18 = vsyncpa %s17, 0
    %19 = vsyncpa [#allocation9], 0
    %s20 = scalar_lea.sflag [#allocation9], 1
    %21 = vsyncpa %s20, 0
    loop: start=0, step=1, limit=4
    $region2: #{tpu_custom_call.1} parent=1 // loop_pre_header
      _
    $region3: #{tpu_custom_call.1} parent=1 // loop_header
      %s23 = sphi 0, %s27
      %p24 = scmp.ge.s32.totalorder %s23, 4
      %s30 = sphi 0, %s42
      %s31 = sphi 0, %s38
      %s32 = sphi 0, %s30
      %s33 = sphi 0, %s31
      %s34 = sphi 0, %s32
      %s35 = sphi 0, %s33
      %s47 = sphi 0, %s49
      %s50 = sphi 0, %s47
      %s51 = sphi 0, %s50
      %s67 = sphi 0, %s51
      %s71 = sphi 0, %s71
      %s73 = sphi 0, %s71
      %s74 = sphi 0, %s73
      %s88 = sphi 0, %s74
      %s92 = sphi 0, %s92
      %s94 = sphi 0, %s92
      %s95 = sphi 0, %s94
      %s109 = sphi 0, %s95
      %s113 = sphi 0, %s113
      %s115 = sphi 0, %s113
      %s116 = sphi 0, %s115
      %s130 = sphi 0, %s116
      %s138 = sphi 0, %s140
      %s141 = sphi 0, %s138
      %s142 = sphi 0, %s141
      %s158 = sphi 0, %s142
      %s166 = sphi 0, %s168
      %s169 = sphi 0, %s166
      %s170 = sphi 0, %s169
      %s186 = sphi 0, %s170
      %s194 = sphi 0, %s196
      %s197 = sphi 0, %s194
      %s198 = sphi 0, %s197
      %s214 = sphi 0, %s198
    $region4: #{tpu_custom_call.1} parent=1 // loop_header_branch
      %26 = sbr.rel (%p24) target = $region8
    $region5: #{tpu_custom_call.1} parent=1 // loop_body
      %s28 = ssub.s32 %s23, 1
      %s29 = ssub.s32 %s23, 2
      %s36 = sadd.s32 1, %s31
      %p37 = scmp.ge.s32.totalorder %s36, 1
      %s38 = scalar_select %p37, 0, %s36
      %s39 = sadd.s32 1, %s30
      %s40 = scalar_select %p37, %s39, %s30
      %p41 = scmp.ge.s32.totalorder %s40, 2
      %s42 = scalar_select %p41, 0, %s40
      %s43 = ssub.s32 %s30, %s42
      %s44 = ssub.s32 %s31, %s38
      %s45 = sor.u32 %s43, %s44
      %p46 = scmp.eq.s32.totalorder %s45, 0
      %s48 = sadd.s32 %s47, 1
      %s49 = scalar_select %p46, %s47, %s48
      %p52 = pneg %p46
      %p53 = scmp.eq.s32.totalorder %s23, 1
      %p54 = por %p52, %p53
      %p55 = scmp.ne.s32.totalorder %s47, %s50
      %p56 = scmp.eq.s32.totalorder %s23, 0
      %p57 = por %p55, %p56
      %p58 = scmp.ne.s32.totalorder %s47, %s50
      %p59 = scmp.eq.s32.totalorder %s28, 1
      %p60 = por %p58, %p59
      %p61 = scmp.ne.s32.totalorder %s50, %s51
      %p62 = scmp.eq.s32.totalorder %s28, 0
      %p63 = por %p61, %p62
      %p64 = scmp.ne.s32.totalorder %s50, %s51
      %p65 = scmp.eq.s32.totalorder %s29, 1
      %p66 = por %p64, %p65
      %p68 = scmp.ne.s32.totalorder %s51, %s67
      %p69 = scmp.eq.s32.totalorder %s29, 0
      %p70 = por %p68, %p69
      %s72 = sadd.s32 %s71, 1
      %p75 = scmp.eq.s32.totalorder %s23, 1
      %p76 = scmp.ne.s32.totalorder %s71, %s73
      %p77 = scmp.eq.s32.totalorder %s23, 0
      %p78 = por %p76, %p77
      %p79 = scmp.ne.s32.totalorder %s71, %s73
      %p80 = scmp.eq.s32.totalorder %s28, 1
      %p81 = por %p79, %p80
      %p82 = scmp.ne.s32.totalorder %s73, %s74
      %p83 = scmp.eq.s32.totalorder %s28, 0
      %p84 = por %p82, %p83
      %p85 = scmp.ne.s32.totalorder %s73, %s74
      %p86 = scmp.eq.s32.totalorder %s29, 1
      %p87 = por %p85, %p86
      %p89 = scmp.ne.s32.totalorder %s74, %s88
      %p90 = scmp.eq.s32.totalorder %s29, 0
      %p91 = por %p89, %p90
      %s93 = sadd.s32 %s92, 1
      %p96 = scmp.eq.s32.totalorder %s23, 1
      %p97 = scmp.ne.s32.totalorder %s92, %s94
      %p98 = scmp.eq.s32.totalorder %s23, 0
      %p99 = por %p97, %p98
      %p100 = scmp.ne.s32.totalorder %s92, %s94
      %p101 = scmp.eq.s32.totalorder %s28, 1
      %p102 = por %p100, %p101
      %p103 = scmp.ne.s32.totalorder %s94, %s95
      %p104 = scmp.eq.s32.totalorder %s28, 0
      %p105 = por %p103, %p104
      %p106 = scmp.ne.s32.totalorder %s94, %s95
      %p107 = scmp.eq.s32.totalorder %s29, 1
      %p108 = por %p106, %p107
      %p110 = scmp.ne.s32.totalorder %s95, %s109
      %p111 = scmp.eq.s32.totalorder %s29, 0
      %p112 = por %p110, %p111
      %s114 = sadd.s32 %s113, 1
      %p117 = scmp.eq.s32.totalorder %s23, 1
      %p118 = scmp.ne.s32.totalorder %s113, %s115
      %p119 = scmp.eq.s32.totalorder %s23, 0
      %p120 = por %p118, %p119
      %p121 = scmp.ne.s32.totalorder %s113, %s115
      %p122 = scmp.eq.s32.totalorder %s28, 1
      %p123 = por %p121, %p122
      %p124 = scmp.ne.s32.totalorder %s115, %s116
      %p125 = scmp.eq.s32.totalorder %s28, 0
      %p126 = por %p124, %p125
      %p127 = scmp.ne.s32.totalorder %s115, %s116
      %p128 = scmp.eq.s32.totalorder %s29, 1
      %p129 = por %p127, %p128
      %p131 = scmp.ne.s32.totalorder %s116, %s130
      %p132 = scmp.eq.s32.totalorder %s29, 0
      %p133 = por %p131, %p132
      %s134 = ssub.s32 %s30, %s42
      %s135 = ssub.s32 %s31, %s38
      %s136 = sor.u32 %s134, %s135
      %p137 = scmp.eq.s32.totalorder %s136, 0
      %s139 = sadd.s32 %s138, 1
      %s140 = scalar_select %p137, %s138, %s139
      %p143 = pneg %p137
      %p144 = scmp.eq.s32.totalorder %s23, 1
      %p145 = por %p143, %p144
      %p146 = scmp.ne.s32.totalorder %s138, %s141
      %p147 = scmp.eq.s32.totalorder %s23, 0
      %p148 = por %p146, %p147
      %p149 = scmp.ne.s32.totalorder %s138, %s141
      %p150 = scmp.eq.s32.totalorder %s28, 1
      %p151 = por %p149, %p150
      %p152 = scmp.ne.s32.totalorder %s141, %s142
      %p153 = scmp.eq.s32.totalorder %s28, 0
      %p154 = por %p152, %p153
      %p155 = scmp.ne.s32.totalorder %s141, %s142
      %p156 = scmp.eq.s32.totalorder %s29, 1
      %p157 = por %p155, %p156
      %p159 = scmp.ne.s32.totalorder %s142, %s158
      %p160 = scmp.eq.s32.totalorder %s29, 0
      %p161 = por %p159, %p160
      %s162 = ssub.s32 %s30, %s42
      %s163 = ssub.s32 %s31, %s38
      %s164 = sor.u32 %s162, %s163
      %p165 = scmp.eq.s32.totalorder %s164, 0
      %s167 = sadd.s32 %s166, 1
      %s168 = scalar_select %p165, %s166, %s167
      %p171 = pneg %p165
      %p172 = scmp.eq.s32.totalorder %s23, 1
      %p173 = por %p171, %p172
      %p174 = scmp.ne.s32.totalorder %s166, %s169
      %p175 = scmp.eq.s32.totalorder %s23, 0
      %p176 = por %p174, %p175
      %p177 = scmp.ne.s32.totalorder %s166, %s169
      %p178 = scmp.eq.s32.totalorder %s28, 1
      %p179 = por %p177, %p178
      %p180 = scmp.ne.s32.totalorder %s169, %s170
      %p181 = scmp.eq.s32.totalorder %s28, 0
      %p182 = por %p180, %p181
      %p183 = scmp.ne.s32.totalorder %s169, %s170
      %p184 = scmp.eq.s32.totalorder %s29, 1
      %p185 = por %p183, %p184
      %p187 = scmp.ne.s32.totalorder %s170, %s186
      %p188 = scmp.eq.s32.totalorder %s29, 0
      %p189 = por %p187, %p188
      %s190 = ssub.s32 %s30, %s42
      %s191 = ssub.s32 %s31, %s38
      %s192 = sor.u32 %s190, %s191
      %p193 = scmp.eq.s32.totalorder %s192, 0
      %s195 = sadd.s32 %s194, 1
      %s196 = scalar_select %p193, %s194, %s195
      %p199 = pneg %p193
      %p200 = scmp.eq.s32.totalorder %s23, 1
      %p201 = por %p199, %p200
      %p202 = scmp.ne.s32.totalorder %s194, %s197
      %p203 = scmp.eq.s32.totalorder %s23, 0
      %p204 = por %p202, %p203
      %p205 = scmp.ne.s32.totalorder %s194, %s197
      %p206 = scmp.eq.s32.totalorder %s28, 1
      %p207 = por %p205, %p206
      %p208 = scmp.ne.s32.totalorder %s197, %s198
      %p209 = scmp.eq.s32.totalorder %s28, 0
      %p210 = por %p208, %p209
      %p211 = scmp.ne.s32.totalorder %s197, %s198
      %p212 = scmp.eq.s32.totalorder %s29, 1
      %p213 = por %p211, %p212
      %p215 = scmp.ne.s32.totalorder %s198, %s214
      %p216 = scmp.eq.s32.totalorder %s29, 0
      %p217 = por %p215, %p216
      %p218 = scmp.le.s32.totalorder 1, %s23
      %p219 = scmp.lt.s32.totalorder %s23, 3
      %p220 = pnand %p218, %p219
      %p221 = pneg %p220
      // Predicated region
      $region9: #{tpu_custom_call.1} parent=5 // pred_check
        _
      $region10: #{tpu_custom_call.1} parent=5 // pred_check_branch
        %223 = sbr.rel (%p220) target = $region12
      $region11: #{tpu_custom_call.1} parent=5 // pred_region
        %s224 = ssub.s32 %s23, 1
        // Predicated region
        $region13: #{tpu_custom_call.1} parent=11 // pred_check
          %p225 = pneg %p84
        $region14: #{tpu_custom_call.1} parent=11 // pred_check_branch
          %227 = sbr.rel (%p225) target = $region16
        $region15: #{tpu_custom_call.1} parent=11 // pred_region
          _
        $region16: #{tpu_custom_call.1} parent=11 // pred_fallthru
          _
        // Predicated region
        $region17: #{tpu_custom_call.1} parent=11 // pred_check
          %p228 = pneg %p105
        $region18: #{tpu_custom_call.1} parent=11 // pred_check_branch
          %230 = sbr.rel (%p228) target = $region20
        $region19: #{tpu_custom_call.1} parent=11 // pred_region
          _
        $region20: #{tpu_custom_call.1} parent=11 // pred_fallthru
          _
        // Predicated region
        $region21: #{tpu_custom_call.1} parent=11 // pred_check
          %p231 = pneg %p126
        $region22: #{tpu_custom_call.1} parent=11 // pred_check_branch
          %233 = sbr.rel (%p231) target = $region24
        $region23: #{tpu_custom_call.1} parent=11 // pred_region
          %s235 = ssub.s32 256, 256
          %236 = vsyncadd [#allocation6], %s235
          %s237 = sshll.u32 [#allocation5], 4
          %s238 = int_to_ptr.vmem [resolvable:$true] %s237
          %243 = dma.hbm_to_vmem [thread:$0]  %s3, 256, %s238, [#allocation6], 64, 64, 4
        $region24: #{tpu_custom_call.1} parent=11 // pred_fallthru
          _
      $region12: #{tpu_custom_call.1} parent=5 // pred_fallthru
        _
      %p244 = scmp.lt.s32.totalorder %s23, 2
      // Predicated region
      $region25: #{tpu_custom_call.1} parent=5 // pred_check
        %p245 = pneg %p244
      $region26: #{tpu_custom_call.1} parent=5 // pred_check_branch
        %247 = sbr.rel (%p245) target = $region28
      $region27: #{tpu_custom_call.1} parent=5 // pred_region
        // Predicated region
        $region29: #{tpu_custom_call.1} parent=27 // pred_check
          %p248 = pneg %p57
        $region30: #{tpu_custom_call.1} parent=27 // pred_check_branch
          %250 = sbr.rel (%p248) target = $region32
        $region31: #{tpu_custom_call.1} parent=27 // pred_region
          %s251 = sand.u32 %s47, 1
          %s252 = scalar_lea.sflag [#allocation3], %s251
          %s253 = sand.u32 %s47, 1
          %s254 = smul.addr %s253, 8
          %s255 = scalar_lea.vmem [#allocation2], %s254
          %s257 = ssub.s32 128, 128
          %258 = vsyncadd %s252, %s257
          %s259 = sadd.s32 %s31, %s30
          %s260 = smul.addr %s259, 128
          %s261 = scalar_lea.hbm %s0, %s260
          %s263 = sshll.u32 %s255, 4
          %s264 = int_to_ptr.vmem [resolvable:$true] %s263
          %266 = dma.hbm_to_vmem [thread:$0]  %s261, 128, %s264, %s252
        $region32: #{tpu_custom_call.1} parent=27 // pred_fallthru
          _
      $region28: #{tpu_custom_call.1} parent=5 // pred_fallthru
        _
      %p267 = scmp.le.s32.totalorder 1, %s23
      %p268 = scmp.lt.s32.totalorder %s23, 3
      %p269 = pnand %p267, %p268
      %p270 = pneg %p269
      // Predicated region
      $region33: #{tpu_custom_call.1} parent=5 // pred_check
        _
      $region34: #{tpu_custom_call.1} parent=5 // pred_check_branch
        %272 = sbr.rel (%p269) target = $region36
      $region35: #{tpu_custom_call.1} parent=5 // pred_region
        %s273 = ssub.s32 %s23, 1
        %s274 = sand.u32 %s50, 1
        %s275 = scalar_lea.sflag [#allocation3], %s274
        %s276 = sand.u32 %s50, 1
        %s277 = smul.addr %s276, 8
        %s278 = scalar_lea.vmem [#allocation2], %s277
        // Predicated region
        $region37: #{tpu_custom_call.1} parent=35 // pred_check
          %p279 = pneg %p63
        $region38: #{tpu_custom_call.1} parent=35 // pred_check_branch
          %281 = sbr.rel (%p279) target = $region40
        $region39: #{tpu_custom_call.1} parent=35 // pred_region
          %282 = dma.done %s275, 128
        $region40: #{tpu_custom_call.1} parent=35 // pred_fallthru
          _
        // Predicated region
        $region41: #{tpu_custom_call.1} parent=35 // pred_check
          %p283 = pneg %p126
        $region42: #{tpu_custom_call.1} parent=35 // pred_check_branch
          %285 = sbr.rel (%p283) target = $region44
        $region43: #{tpu_custom_call.1} parent=35 // pred_region
          %286 = dma.done [#allocation6], 256
        $region44: #{tpu_custom_call.1} parent=35 // pred_fallthru
          _
        %s287 = sand.u32 %s50, 1
        %s288 = scalar_lea.sflag [#allocation3], %s287
        %s289 = sand.u32 %s50, 1
        %s290 = smul.addr %s289, 8
        %s291 = scalar_lea.vmem [#allocation2], %s290
        %p292 = pneg %p63
        %p293 = pneg %p60
        %p294 = pneg %p84
        %p295 = pneg %p81
        %p296 = pneg %p105
        %p297 = pneg %p102
        %p298 = pneg %p126
        %p299 = pneg %p123
        %p300 = pneg %p154
        %p301 = pneg %p151
        %s302 = sand.u32 %s141, 1
        %s303 = scalar_lea.sflag [#allocation4], %s302
        %s304 = sand.u32 %s141, 1
        %s305 = smul.addr %s304, 4
        %s306 = scalar_lea.vmem [#allocation7], %s305
        %p307 = pneg %p182
        %p308 = pneg %p179
        %s309 = sand.u32 %s28, 1
        %s310 = scalar_lea.sflag [#allocation9], %s309
        %s311 = sand.u32 %s169, 1
        %s312 = smul.addr %s311, 4
        %s313 = scalar_lea.vmem [#allocation8], %s312
        %p314 = pneg %p210
        %p315 = pneg %p207
        %s316 = sand.u32 %s28, 1
        %s317 = scalar_lea.sflag [#allocation9], %s316
        %s318 = sand.u32 %s197, 1
        %s319 = smul.addr %s318, 4
        %s320 = scalar_lea.vmem [#allocation10], %s319
        %v322 = vld [vmem:[%s278] sm:$0xff]
        %v323 = vld [vmem:[%s1] sm:$0x1]
        %v324 = vld [vmem:[%s2] sm:$0x1]
        %vm325 = vcmask 261120
        %v326 = vsel %vm325, %v322, 0.0
        %327 = vadd.xlane.f32.xlu0 %v326
        %v328 = vpop.xlane.xlu0 %327
        %v329 = vrcp.pop 32.0
        %v330 = vmul.f32 %v328, %v329
        %v331 = vsub.f32 %v322, %v330
        %v332 = vmul.f32 %v331, %v331
        %v333 = vsel %vm325, %v332, 0.0
        %334 = vadd.xlane.f32.xlu0 %v333
        %v335 = vpop.xlane.xlu0 %334
        %v336 = vmul.f32 %v335, %v329
        %v337 = vadd.f32 %v336, 1e-05
        %v338 = vrsqrt.pop %v337
        %v339 = vmul.f32 %v331, %v338
        %v341 = vlaneseq
        %v342 = vshrl.u32 %v341, 7
        %v343 = vsub.s32 0, %v342
        %v344 = vrot.slane %v323, %v343
        %v346 = vmul.f32 %v344, %v339
        %v348 = vlaneseq
        %v349 = vshrl.u32 %v348, 7
        %v350 = vsub.s32 0, %v349
        %v351 = vrot.slane %v324, %v350
        %v353 = vadd.f32 %v346, %v351
        %v354 = vpack.c.bf16 %v353, %v353
        %v355 = vld [vmem:[#allocation5] sm:$0xf]
        %v356 = vld [vmem:[#allocation5 + $0x4] sm:$0xf]
        %v357 = vld [vmem:[#allocation5 + $0x8] sm:$0xf]
        %v358 = vld [vmem:[#allocation5 + $0xc] sm:$0xf]
        %v363 = vunpack.c.l.b16 %v355
        %v364 = vunpack.c.l.b16 %v356
        %v365 = vunpack.c.l.b16 %v357
        %v366 = vunpack.c.l.b16 %v358
        %v367 = vpack.c.b16 %v364, %v363
        %v368 = vpack.c.b16 %v366, %v365
        %v372 = vsel %vm325, %v354, 0
        %374 = vmatprep.subr.bf16.mxu0 0
        %375 = vmatpush1.bf16.msra.mxu0 0
        %376 = vmatprep.subr.bf16.mxu0 0
        %377 = vmatpush1.bf16.msra.mxu0 0
        %378 = vmatprep.subr.bf16.mxu0 0
        %379 = vmatpush1.bf16.msra.mxu0 0
        %380 = vmatprep.subr.bf16.mxu0 0
        %381 = vmatpush1.bf16.msra.mxu0 0
        %382 = vmatprep.subr.bf16.mxu0 0
        %383 = vmatpush1.bf16.msra.mxu0 0
        %384 = vmatprep.subr.bf16.mxu0 0
        %385 = vmatpush1.bf16.msra.mxu0 0
        %386 = vmatprep.subr.bf16.mxu0 0
        %387 = vmatpush1.bf16.msra.mxu0 %v368
        %388 = vmatprep.subr.bf16.mxu0 0
        %389 = vmatpush1.bf16.msra.mxu0 %v367
        %390 = vmatprep.subr.bf16.mxu0 0
        %391 = vmatpush2.bf16.msra.mxu0 0
        %392 = vmatprep.subr.bf16.mxu0 0
        %393 = vmatpush2.bf16.msra.mxu0 0
        %394 = vmatprep.subr.bf16.mxu0 0
        %395 = vmatpush2.bf16.msra.mxu0 0
        %396 = vmatprep.subr.bf16.mxu0 0
        %397 = vmatpush2.bf16.msra.mxu0 0
        %398 = vmatprep.subr.bf16.mxu0 0
        %399 = vmatpush2.bf16.msra.mxu0 0
        %400 = vmatprep.subr.bf16.mxu0 0
        %401 = vmatpush2.bf16.msra.mxu0 0
        %402 = vmatprep.subr.bf16.mxu0 0
        %403 = vmatpush2.bf16.msra.mxu0 0
        %404 = vmatprep.subr.bf16.mxu0 0
        %405 = vmatpush2.bf16.msra.mxu0 0
        %406 = vmatprep.mubr.bf16.mxu0 0
        %407 = vmatmul.mubr.bf16.gmra.mxu0 %v372
        %v408 = vpop.f32.mrf.mxu0
        %v409 = vadd.f32 0.0, %v408
        %v410 = vpop.f32.mrf.mxu0
        %v411 = vpop.f32.mrf.mxu0
        %v412 = vpop.f32.mrf.mxu0
        %413 = vdwg.mxu0
        %v414 = vpack.c.bf16 %v409, %v409
        %vm415 = vcmask 257024
        %416 = vst.msk [vmem:[%s306] sm:$0xf] %vm415, %v414
        %v418 = vunpack.c.l.b16 %v414
        %v419 = vpack.c.b16 %v418, %v418
        %420 = vrot.lane.b32.xlu0 %v419, 96
        %v421 = vpop.permute.xlu0 %420
        %423 = vst.msk [vmem:[%s313] sm:$0xf] %vm415, %v421
        %424 = vrot.lane.b32.xlu0 %v419, 64
        %v425 = vpop.permute.xlu0 %424
        %427 = vst.msk [vmem:[%s320] sm:$0xf] %vm415, %v425
        %s428 = sand.u32 %s141, 1
        %s429 = scalar_lea.sflag [#allocation4], %s428
        %s430 = sand.u32 %s141, 1
        %s431 = smul.addr %s430, 4
        %s432 = scalar_lea.vmem [#allocation7], %s431
        %s433 = sand.u32 %s28, 1
        %s434 = scalar_lea.sflag [#allocation9], %s433
        %s435 = sand.u32 %s169, 1
        %s436 = smul.addr %s435, 4
        %s437 = scalar_lea.vmem [#allocation8], %s436
        %s438 = sand.u32 %s28, 1
        %s439 = scalar_lea.sflag [#allocation9], %s438
        %s440 = sand.u32 %s197, 1
        %s441 = smul.addr %s440, 4
        %s442 = scalar_lea.vmem [#allocation10], %s441
        // Predicated region
        $region45: #{tpu_custom_call.1} parent=35 // pred_check
          %p443 = pneg %p151
        $region46: #{tpu_custom_call.1} parent=35 // pred_check_branch
          %445 = sbr.rel (%p443) target = $region48
        $region47: #{tpu_custom_call.1} parent=35 // pred_region
          %s447 = ssub.s32 64, 64
          %448 = vsyncadd %s429, %s447
          %s449 = sadd.s32 %s33, %s32
          %s450 = smul.addr %s449, 64
          %s451 = scalar_lea.hbm %s4, %s450
          %s453 = sshll.u32 %s432, 4
          %s454 = int_to_ptr.vmem [resolvable:$true] %s453
          %456 = dma.vmem_to_hbm [thread:$0]  %s454, 64, %s451, %s429
        $region48: #{tpu_custom_call.1} parent=35 // pred_fallthru
          _
        // Predicated region
        $region49: #{tpu_custom_call.1} parent=35 // pred_check
          %p457 = pneg %p179
        $region50: #{tpu_custom_call.1} parent=35 // pred_check_branch
          %459 = sbr.rel (%p457) target = $region52
        $region51: #{tpu_custom_call.1} parent=35 // pred_region
          %s461 = ssub.s32 64, 64
          %462 = vsyncadd %s434, %s461
          %s463 = sadd.s32 %s33, %s32
          %s464 = smul.addr %s463, 64
          %s465 = scalar_lea.hbm %s5, %s464
          %s467 = sshll.u32 %s437, 4
          %s468 = int_to_ptr.vmem [resolvable:$true] %s467
          %470 = dma.vmem_to_hbm [thread:$0]  %s468, 64, %s465, %s434
        $region52: #{tpu_custom_call.1} parent=35 // pred_fallthru
          _
        // Predicated region
        $region53: #{tpu_custom_call.1} parent=35 // pred_check
          %p471 = pneg %p207
        $region54: #{tpu_custom_call.1} parent=35 // pred_check_branch
          %473 = sbr.rel (%p471) target = $region56
        $region55: #{tpu_custom_call.1} parent=35 // pred_region
          %s475 = ssub.s32 64, 64
          %476 = vsyncadd %s439, %s475
          %s477 = sadd.s32 %s33, %s32
          %s478 = smul.addr %s477, 64
          %s479 = scalar_lea.hbm %s6, %s478
          %s481 = sshll.u32 %s442, 4
          %s482 = int_to_ptr.vmem [resolvable:$true] %s481
          %484 = dma.vmem_to_hbm [thread:$0]  %s482, 64, %s479, %s439
        $region56: #{tpu_custom_call.1} parent=35 // pred_fallthru
          _
      $region36: #{tpu_custom_call.1} parent=5 // pred_fallthru
        _
      %p485 = scmp.le.s32.totalorder 2, %s23
      // Predicated region
      $region57: #{tpu_custom_call.1} parent=5 // pred_check
        %p486 = pneg %p485
      $region58: #{tpu_custom_call.1} parent=5 // pred_check_branch
        %488 = sbr.rel (%p486) target = $region60
      $region59: #{tpu_custom_call.1} parent=5 // pred_region
        %s489 = ssub.s32 %s23, 2
        // Predicated region
        $region61: #{tpu_custom_call.1} parent=59 // pred_check
          %p490 = pneg %p157
        $region62: #{tpu_custom_call.1} parent=59 // pred_check_branch
          %492 = sbr.rel (%p490) target = $region64
        $region63: #{tpu_custom_call.1} parent=59 // pred_region
          %s493 = sand.u32 %s142, 1
          %s494 = scalar_lea.sflag [#allocation4], %s493
          %s495 = sand.u32 %s142, 1
          %s496 = smul.addr %s495, 4
          %s497 = scalar_lea.vmem [#allocation7], %s496
          %498 = dma.done %s494, 64
        $region64: #{tpu_custom_call.1} parent=59 // pred_fallthru
          _
        // Predicated region
        $region65: #{tpu_custom_call.1} parent=59 // pred_check
          %p499 = pneg %p185
        $region66: #{tpu_custom_call.1} parent=59 // pred_check_branch
          %501 = sbr.rel (%p499) target = $region68
        $region67: #{tpu_custom_call.1} parent=59 // pred_region
          %s502 = sand.u32 %s29, 1
          %s503 = scalar_lea.sflag [#allocation9], %s502
          %s504 = sand.u32 %s170, 1
          %s505 = smul.addr %s504, 4
          %s506 = scalar_lea.vmem [#allocation8], %s505
          %507 = dma.done %s503, 64
        $region68: #{tpu_custom_call.1} parent=59 // pred_fallthru
          _
        // Predicated region
        $region69: #{tpu_custom_call.1} parent=59 // pred_check
          %p508 = pneg %p213
        $region70: #{tpu_custom_call.1} parent=59 // pred_check_branch
          %510 = sbr.rel (%p508) target = $region72
        $region71: #{tpu_custom_call.1} parent=59 // pred_region
          %s511 = sand.u32 %s29, 1
          %s512 = scalar_lea.sflag [#allocation9], %s511
          %s513 = sand.u32 %s198, 1
          %s514 = smul.addr %s513, 4
          %s515 = scalar_lea.vmem [#allocation10], %s514
          %516 = dma.done %s512, 64
        $region72: #{tpu_custom_call.1} parent=59 // pred_fallthru
          _
      $region60: #{tpu_custom_call.1} parent=5 // pred_fallthru
        _
    $region6: #{tpu_custom_call.1} parent=1 // loop_footer
      %s27 = sadd.s32 1, %s23
    $region7: #{tpu_custom_call.1} parent=1 // loop_footer_branch
      %22 = sbr.rel target = $region3
    $region8: #{tpu_custom_call.1} parent=1 // loop_exit
      _
    %517 = vsyncpa [#allocation3], 1
    %s518 = scalar_lea.sflag [#allocation3], 1
    %519 = vsyncpa %s518, 1
    %520 = vsyncpa [#allocation6], 1
    %521 = vsyncpa [#allocation4], 1
    %s522 = scalar_lea.sflag [#allocation4], 1
    %523 = vsyncpa %s522, 1
    %524 = vsyncpa [#allocation9], 1
    %s525 = scalar_lea.sflag [#allocation9], 1
    %526 = vsyncpa %s525, 1

</llo_original>
